<compile_context>
chip_gen: v5e
topology: v5e:2x2
jax: 0.10.0
libtpu: 0.0.40
codegen_flags: <defaults>
</compile_context>

<pallas_src>
import functools
import math

import jax
import jax.numpy as jnp
from jax.experimental import pallas as pl
from jax.experimental.pallas import tpu as pltpu


def _round_up(x, m):
    return ((x + m - 1) // m) * m


def _vmem_capacity_bytes():
    """Generation-aware VMEM capacity (v5e/v6e: 128 MiB, v7x: 64 MiB)."""
    try:
        info = pltpu.get_tpu_info()
        cap = getattr(info, "vmem_capacity_bytes", None)
        if cap:
            return int(cap)
    except Exception:
        pass
    return 64 * 1024 * 1024  # conservative (v7x) fallback


# ---------------------------------------------------------------------------
# Adjacency build (XLA scatter; stays outside Pallas).
# ---------------------------------------------------------------------------
def build_adjacency(edge_index, num_nodes, n_pad_rows, n_pad_cols, *,
                    a_dtype=jnp.int8):
    """Unnormalized edge-count adjacency (dst rows, src cols), built directly
    at the padded shape in the streaming dtype, plus exact f32 1/deg."""
    src = edge_index[0]
    dst = edge_index[1]
    counts = jnp.zeros((n_pad_rows, n_pad_cols), jnp.int32).at[dst, src].add(1)
    a = counts.astype(a_dtype)  # small integer counts: exact in int8/bf16
    deg = jnp.zeros((n_pad_rows,), jnp.float32).at[dst].add(1.0)
    inv_deg = (1.0 / jnp.maximum(deg, 1.0)).reshape(n_pad_rows, 1)
    return a, inv_deg


# ---------------------------------------------------------------------------
# Fused two-layer kernel (graphs where A fits in VMEM).
# ---------------------------------------------------------------------------
def _fused_sage_kernel(a_ref, inv_ref, x_ref, wl1_ref, wr1_ref, b1_ref,
                       wl2_ref, wr2_ref, b2_ref, o_ref):
    a = a_ref[...]        # bf16 edge counts (exact small ints)
    x = x_ref[...]        # bf16
    inv = inv_ref[...]    # f32 (N,1) exact 1/deg
    # layer 1: relu(lin_l(mean_agg(X)) + lin_r(X) + b1)
    agg1 = inv * jnp.dot(a, x, preferred_element_type=jnp.float32)
    xf = x.astype(jnp.float32)
    h = (jnp.dot(agg1, wl1_ref[...], preferred_element_type=jnp.float32)
         + jnp.dot(xf, wr1_ref[...], preferred_element_type=jnp.float32)
         + b1_ref[...])
    h = jnp.maximum(h, 0.0)
    # layer 2: lin_l(mean_agg(H)) + lin_r(H) + b2   (H stays on-chip)
    agg2 = inv * jnp.dot(a, h.astype(a.dtype),
                         preferred_element_type=jnp.float32)
    out = (jnp.dot(agg2, wl2_ref[...], preferred_element_type=jnp.float32)
           + jnp.dot(h, wr2_ref[...], preferred_element_type=jnp.float32)
           + b2_ref[...])
    o_ref[...] = out.astype(o_ref.dtype)


def fused_graphsage(a_bf16, inv_deg, x_bf16, params, *, vmem_limit_bytes):
    n, f_in = x_bf16.shape
    hidden = params["w_l1"].shape[1]
    f_out = params["w_l2"].shape[1]

    def full(shape):
        ndim = len(shape)
        return pl.BlockSpec(shape, lambda i, _n=ndim: (0,) * _n)

    # TODO(synk): split the fused path into 2 row blocks so both v7x
    # TensorCores participate (layer-2 aggregation needs all H rows, so this
    # requires a small cross-core exchange).
    return pl.pallas_call(
        _fused_sage_kernel,
        out_shape=jax.ShapeDtypeStruct((n, f_out), jnp.float32),
        grid=(1,),
        in_specs=[
            full((n, n)),            # A (bf16 counts)
            full((n, 1)),            # 1/deg (f32)
            full((n, f_in)),         # X (bf16)
            full((f_in, hidden)),    # W_l1
            full((f_in, hidden)),    # W_r1
            full((1, hidden)),       # b1
            full((hidden, f_out)),   # W_l2
            full((hidden, f_out)),   # W_r2
            full((1, f_out)),        # b2
        ],
        out_specs=full((n, f_out)),
        compiler_params=pltpu.CompilerParams(
            vmem_limit_bytes=vmem_limit_bytes),
    )(a_bf16, inv_deg, x_bf16, params["w_l1"], params["w_r1"], params["b1"],
      params["w_l2"], params["w_r2"], params["b2"])


# ---------------------------------------------------------------------------
# Tiled single-layer kernel (large graphs): grid = (row tiles, K tiles).
# ---------------------------------------------------------------------------
def _sage_layer_tiled_kernel(a_ref, xk_ref, xi_ref, inv_ref, wl_ref, wr_ref,
                             b_ref, o_ref, acc_ref, *, apply_relu):
    k = pl.program_id(1)

    @pl.when(k == 0)
    def _():
        acc_ref[...] = jnp.zeros_like(acc_ref)

    # int8 edge-count A tile -> bf16 in VMEM (cheap VPU cast; kernel is
    # DMA-bound on the int8 A stream); accumulate neighbor sums in f32.
    a = a_ref[...].astype(xk_ref.dtype)
    acc_ref[...] += jnp.dot(a, xk_ref[...],
                            preferred_element_type=jnp.float32)

    @pl.when(k == pl.num_programs(1) - 1)
    def _():
        # exact f32 1/deg applied once per row tile; root term + bias hoisted
        # out of the K reduction; single store of the whole row tile.
        agg = acc_ref[...] * inv_ref[...]
        out = (jnp.dot(agg, wl_ref[...], preferred_element_type=jnp.float32)
               + jnp.dot(xi_ref[...].astype(jnp.float32), wr_ref[...],
                         preferred_element_type=jnp.float32)
               + b_ref[...])
        if apply_relu:
            out = jnp.maximum(out, 0.0)
        o_ref[...] = out.astype(o_ref.dtype)


def sage_layer_tiled(a_i8, inv_deg, x, w_l, w_r, b, *, apply_relu, tm, tk,
                     out_dtype, vmem_limit_bytes):
    """One SAGEConv layer; A is pre-padded int8 counts, inv_deg is f32 (R,1)."""
    n_pad_r, n_pad_c = a_i8.shape
    f_in = x.shape[1]
    f_out = w_l.shape[1]
    assert n_pad_r % tm == 0 and n_pad_c % tk == 0
    assert x.shape[0] >= max(n_pad_r, n_pad_c)

    kernel = functools.partial(_sage_layer_tiled_kernel, apply_relu=apply_relu)
    return pl.pallas_call(
        kernel,
        out_shape=jax.ShapeDtypeStruct((n_pad_r, f_out), out_dtype),
        grid_spec=pltpu.PrefetchScalarGridSpec(
            num_scalar_prefetch=0,
            grid=(n_pad_r // tm, n_pad_c // tk),
            in_specs=[
                pl.BlockSpec((tm, tk), lambda i, k: (i, k)),       # A (int8)
                pl.BlockSpec((tk, f_in), lambda i, k: (k, 0)),     # X (reduce)
                pl.BlockSpec((tm, f_in), lambda i, k: (i, 0)),     # X (root)
                pl.BlockSpec((tm, 1), lambda i, k: (i, 0)),        # 1/deg
                pl.BlockSpec((f_in, f_out), lambda i, k: (0, 0)),  # W_l
                pl.BlockSpec((f_in, f_out), lambda i, k: (0, 0)),  # W_r
                pl.BlockSpec((1, f_out), lambda i, k: (0, 0)),     # bias
            ],
            out_specs=pl.BlockSpec((tm, f_out), lambda i, k: (i, 0)),
            scratch_shapes=[pltpu.VMEM((tm, f_in), jnp.float32)],
        ),
        compiler_params=pltpu.CompilerParams(
            dimension_semantics=("parallel", "arbitrary"),
            vmem_limit_bytes=vmem_limit_bytes,
        ),
    )(a_i8, x, x, inv_deg, w_l, w_r, b)


# ---------------------------------------------------------------------------
# Model wrapper
# ---------------------------------------------------------------------------
_DEFAULT_TM = 1024
_DEFAULT_TK = 4096


def graphsage_forward(x, edge_index, params, *, fused_max_n=None,
                      tm=_DEFAULT_TM, tk=_DEFAULT_TK):
    """GraphSAGEModel.forward: relu(conv1(x, ei)) -> conv2(., ei)."""
    ei = jnp.squeeze(edge_index, 0)
    n = x.shape[0]
    vmem = _vmem_capacity_bytes()

    if fused_max_n is None:
        # bf16 A (double-buffered) kept to ~60% of VMEM -> ~3.2k on v7x,
        # 4k (cap) on v5e/v6e. Weights/X/H/out are negligible.
        fused_max_n = min(4096, int(math.sqrt(0.30 * vmem / 2)))

    if n <= fused_max_n:
        # fused kernel: A read from HBM once, reused for both layers.
        a_bf, inv_deg = build_adjacency(ei, n, n, n, a_dtype=jnp.bfloat16)
        return fused_graphsage(a_bf, inv_deg, x.astype(jnp.bfloat16), params,
                               vmem_limit_bytes=int(0.85 * vmem))

    # Large graphs: stream unnormalized edge-count A in int8 (half the bytes
    # of bf16, exact), X/H in bf16, f32 accumulation, exact 1/deg finalize.
    tm = min(tm, _round_up(n, 256))
    tk = min(tk, _round_up(n, 256))
    n_pad_r = _round_up(n, tm)   # rows padded to tm,
    n_pad_c = _round_up(n, tk)   # cols padded to tk (independently, no lcm).
    a_i8, inv_deg = build_adjacency(ei, n, n_pad_r, n_pad_c,
                                    a_dtype=jnp.int8)

    # X/H row padding is O(N*f) — negligible next to the O(N^2) A stream.
    n_pad_x = _round_up(max(n_pad_r, n_pad_c), math.lcm(tm, tk))
    x_b = jnp.zeros((n_pad_x, x.shape[1]), jnp.bfloat16).at[:n].set(
        x.astype(jnp.bfloat16))

    vmem_limit = min(int(0.75 * vmem), 96 * 1024 * 1024)
    h = sage_layer_tiled(a_i8, inv_deg, x_b,
                         params["w_l1"], params["w_r1"], params["b1"],
                         apply_relu=True, tm=tm, tk=tk,
                         out_dtype=jnp.bfloat16, vmem_limit_bytes=vmem_limit)
    # H handoff (lane dim 16 < 128 -> masked stores; minor vs the A stream).
    h_b = jnp.zeros((n_pad_x, h.shape[1]), jnp.bfloat16).at[:n_pad_r].set(h)
    out = sage_layer_tiled(a_i8, inv_deg, h_b,
                           params["w_l2"], params["w_r2"], params["b2"],
                           apply_relu=False, tm=tm, tk=tk,
                           out_dtype=jnp.float32, vmem_limit_bytes=vmem_limit)
    return out[:n]


def _reference_forward(x, edge_index, params):
    """Pure-JAX f32 reference (same math as the PyTorch module)."""
    n = x.shape[0]
    src, dst = edge_index[0], edge_index[1]
    a = jnp.zeros((n, n), jnp.float32).at[dst, src].add(1.0)
    a = a / jnp.maximum(a.sum(axis=1, keepdims=True), 1.0)
    h = jnp.maximum(
        a @ x @ params["w_l1"] + x @ params["w_r1"] + params["b1"], 0.0)
    return a @ h @ params["w_l2"] + h @ params["w_r2"] + params["b2"]


if __name__ == "__main__":
    num_features = 4
    hidden = 16

    key = jax.random.PRNGKey(0)
    kx, ke, k1, k2, k3, k4, k5, k6, kx2, ke2 = jax.random.split(key, 10)

    # SAGEConv: lin_l (neighbor path) has bias, lin_r (root path) has no bias.
    params = {
        "w_l1": 0.1 * jax.random.normal(k1, (num_features, hidden), jnp.float32),
        "w_r1": 0.1 * jax.random.normal(k2, (num_features, hidden), jnp.float32),
        "b1": 0.1 * jax.random.normal(k3, (1, hidden), jnp.float32),
        "w_l2": 0.1 * jax.random.normal(k4, (hidden, num_features), jnp.float32),
        "w_r2": 0.1 * jax.random.normal(k5, (hidden, num_features), jnp.float32),
        "b2": 0.1 * jax.random.normal(k6, (1, num_features), jnp.float32),
    }

    # ---- case 1: toy module shapes -> fused single-kernel path ------------
    num_nodes, num_edges = 8, 16
    x = jax.random.normal(kx, (num_nodes, num_features), jnp.float32)
    edge_index = jax.random.randint(ke, (1, 2, num_edges), 0, num_nodes,
                                    dtype=jnp.int32)
    out = graphsage_forward(x, edge_index, params)
    jax.block_until_ready(out)
    assert out.shape == (num_nodes, num_features)
    ref = _reference_forward(x, jnp.squeeze(edge_index, 0), params)
    assert float(jnp.max(jnp.abs(out - ref))) < 3e-2  # bf16 X/H tolerance

    # ---- case 2: exercise the tiled / accumulator path (int8 A stream) ----
    n2, e2 = 256, 1024
    x2 = jax.random.normal(kx2, (n2, num_features), jnp.float32)
    ei2 = jax.random.randint(ke2, (1, 2, e2), 0, n2, dtype=jnp.int32)
    out2 = graphsage_forward(x2, ei2, params, fused_max_n=0, tm=128, tk=128)
    jax.block_until_ready(out2)
    assert out2.shape == (n2, num_features)
    ref2 = _reference_forward(x2, jnp.squeeze(ei2, 0), params)
    assert float(jnp.max(jnp.abs(out2 - ref2))) < 3e-2  # bf16 X/H tolerance

    print("KERNEL_OK")
</pallas_src>

<mosaic_0001>
module attributes {stable_mosaic.version = 11 : i64} {
  func.func @_fused_sage_kernel(%arg0: i32, %arg1: memref<8x8xbf16, #tpu.memory_space<vmem>>, %arg2: memref<8x1xf32, #tpu.memory_space<vmem>>, %arg3: memref<8x4xbf16, #tpu.memory_space<vmem>>, %arg4: memref<4x16xf32, #tpu.memory_space<vmem>>, %arg5: memref<4x16xf32, #tpu.memory_space<vmem>>, %arg6: memref<1x16xf32, #tpu.memory_space<vmem>>, %arg7: memref<16x4xf32, #tpu.memory_space<vmem>>, %arg8: memref<16x4xf32, #tpu.memory_space<vmem>>, %arg9: memref<1x4xf32, #tpu.memory_space<vmem>>, %arg10: memref<8x4xf32, #tpu.memory_space<vmem>>) attributes {dimension_semantics = [#tpu.dimension_semantics<arbitrary>], iteration_bounds = array<i64: 1>, scalar_prefetch = 0 : i64, scratch_operands = 0 : i64, tpu.core_type = #tpu.core_type<tc>, window_params = [{pipeline_mode = #tpu.pipeline_mode<synchronous>, transform_indices = @transform_0, window_bounds = array<i64: 8, 8>}, {pipeline_mode = #tpu.pipeline_mode<synchronous>, transform_indices = @transform_1, window_bounds = array<i64: 8, 1>}, {pipeline_mode = #tpu.pipeline_mode<synchronous>, transform_indices = @transform_2, window_bounds = array<i64: 8, 4>}, {pipeline_mode = #tpu.pipeline_mode<synchronous>, transform_indices = @transform_3, window_bounds = array<i64: 4, 16>}, {pipeline_mode = #tpu.pipeline_mode<synchronous>, transform_indices = @transform_4, window_bounds = array<i64: 4, 16>}, {pipeline_mode = #tpu.pipeline_mode<synchronous>, transform_indices = @transform_5, window_bounds = array<i64: 1, 16>}, {pipeline_mode = #tpu.pipeline_mode<synchronous>, transform_indices = @transform_6, window_bounds = array<i64: 16, 4>}, {pipeline_mode = #tpu.pipeline_mode<synchronous>, transform_indices = @transform_7, window_bounds = array<i64: 16, 4>}, {pipeline_mode = #tpu.pipeline_mode<synchronous>, transform_indices = @transform_8, window_bounds = array<i64: 1, 4>}, {pipeline_mode = #tpu.pipeline_mode<synchronous>, transform_indices = @transform_9, window_bounds = array<i64: 8, 4>}]} {
    %c0 = arith.constant 0 : index
    %c0_0 = arith.constant 0 : index
    %0 = vector.load %arg1[%c0, %c0_0] : memref<8x8xbf16, #tpu.memory_space<vmem>>, vector<8x8xbf16>
    %c0_1 = arith.constant 0 : index
    %c0_2 = arith.constant 0 : index
    %1 = vector.load %arg3[%c0_1, %c0_2] : memref<8x4xbf16, #tpu.memory_space<vmem>>, vector<8x4xbf16>
    %c0_3 = arith.constant 0 : index
    %c0_4 = arith.constant 0 : index
    %2 = vector.load %arg2[%c0_3, %c0_4] : memref<8x1xf32, #tpu.memory_space<vmem>>, vector<8x1xf32>
    %cst = arith.constant dense<0.000000e+00> : vector<8x4xf32>
    %3 = tpu.matmul %0, %1, %cst {dimension_numbers = #tpu.dot_dimension_numbers<[1], [0], [0], [1], [0, 0, 1, 1], [], []>} : vector<8x8xbf16>, vector<8x4xbf16>, vector<8x4xf32> -> vector<8x4xf32>
    %4 = vector.broadcast %2 : vector<8x1xf32> to vector<8x4xf32>
    %5 = arith.mulf %4, %3 : vector<8x4xf32>
    %6 = arith.extf %1 : vector<8x4xbf16> to vector<8x4xf32>
    %c0_5 = arith.constant 0 : index
    %c0_6 = arith.constant 0 : index
    %7 = vector.load %arg4[%c0_5, %c0_6] : memref<4x16xf32, #tpu.memory_space<vmem>>, vector<4x16xf32>
    %cst_7 = arith.constant dense<0.000000e+00> : vector<8x16xf32>
    %8 = tpu.matmul %5, %7, %cst_7 {dimension_numbers = #tpu.dot_dimension_numbers<[1], [0], [0], [1], [0, 0, 1, 1], [], []>} : vector<8x4xf32>, vector<4x16xf32>, vector<8x16xf32> -> vector<8x16xf32>
    %c0_8 = arith.constant 0 : index
    %c0_9 = arith.constant 0 : index
    %9 = vector.load %arg5[%c0_8, %c0_9] : memref<4x16xf32, #tpu.memory_space<vmem>>, vector<4x16xf32>
    %cst_10 = arith.constant dense<0.000000e+00> : vector<8x16xf32>
    %10 = tpu.matmul %6, %9, %cst_10 {dimension_numbers = #tpu.dot_dimension_numbers<[1], [0], [0], [1], [0, 0, 1, 1], [], []>} : vector<8x4xf32>, vector<4x16xf32>, vector<8x16xf32> -> vector<8x16xf32>
    %11 = arith.addf %8, %10 : vector<8x16xf32>
    %c0_11 = arith.constant 0 : index
    %c0_12 = arith.constant 0 : index
    %12 = vector.load %arg6[%c0_11, %c0_12] : memref<1x16xf32, #tpu.memory_space<vmem>>, vector<1x16xf32>
    %13 = vector.broadcast %12 : vector<1x16xf32> to vector<8x16xf32>
    %14 = arith.addf %11, %13 : vector<8x16xf32>
    %cst_13 = arith.constant 0.000000e+00 : f32
    %15 = vector.broadcast %cst_13 : f32 to vector<8x16xf32>
    %16 = arith.maximumf %14, %15 : vector<8x16xf32>
    %17 = arith.truncf %16 : vector<8x16xf32> to vector<8x16xbf16>
    %cst_14 = arith.constant dense<0.000000e+00> : vector<8x16xf32>
    %18 = tpu.matmul %0, %17, %cst_14 {dimension_numbers = #tpu.dot_dimension_numbers<[1], [0], [0], [1], [0, 0, 1, 1], [], []>} : vector<8x8xbf16>, vector<8x16xbf16>, vector<8x16xf32> -> vector<8x16xf32>
    %19 = vector.broadcast %2 : vector<8x1xf32> to vector<8x16xf32>
    %20 = arith.mulf %19, %18 : vector<8x16xf32>
    %c0_15 = arith.constant 0 : index
    %c0_16 = arith.constant 0 : index
    %21 = vector.load %arg7[%c0_15, %c0_16] : memref<16x4xf32, #tpu.memory_space<vmem>>, vector<16x4xf32>
    %cst_17 = arith.constant dense<0.000000e+00> : vector<8x4xf32>
    %22 = tpu.matmul %20, %21, %cst_17 {dimension_numbers = #tpu.dot_dimension_numbers<[1], [0], [0], [1], [0, 0, 1, 1], [], []>} : vector<8x16xf32>, vector<16x4xf32>, vector<8x4xf32> -> vector<8x4xf32>
    %c0_18 = arith.constant 0 : index
    %c0_19 = arith.constant 0 : index
    %23 = vector.load %arg8[%c0_18, %c0_19] : memref<16x4xf32, #tpu.memory_space<vmem>>, vector<16x4xf32>
    %cst_20 = arith.constant dense<0.000000e+00> : vector<8x4xf32>
    %24 = tpu.matmul %16, %23, %cst_20 {dimension_numbers = #tpu.dot_dimension_numbers<[1], [0], [0], [1], [0, 0, 1, 1], [], []>} : vector<8x16xf32>, vector<16x4xf32>, vector<8x4xf32> -> vector<8x4xf32>
    %25 = arith.addf %22, %24 : vector<8x4xf32>
    %c0_21 = arith.constant 0 : index
    %c0_22 = arith.constant 0 : index
    %26 = vector.load %arg9[%c0_21, %c0_22] : memref<1x4xf32, #tpu.memory_space<vmem>>, vector<1x4xf32>
    %27 = vector.broadcast %26 : vector<1x4xf32> to vector<8x4xf32>
    %28 = arith.addf %25, %27 : vector<8x4xf32>
    %c0_23 = arith.constant 0 : index
    %c0_24 = arith.constant 0 : index
    %29 = vector.load %arg10[%c0_23, %c0_24] : memref<8x4xf32, #tpu.memory_space<vmem>>, vector<8x4xf32>
    tpu.vector_store %arg10[%c0_23, %c0_24], %28 {strides = array<i32>} : memref<8x4xf32, #tpu.memory_space<vmem>>, vector<8x4xf32>,
    return
  }
  func.func @transform_0(%arg0: i32) -> (i32, i32) {
    %c0_i32 = arith.constant 0 : i32
    %c0_i32_0 = arith.constant 0 : i32
    %c0_i32_1 = arith.constant 0 : i32
    return %c0_i32, %c0_i32_0 : i32, i32
  }
  func.func @transform_1(%arg0: i32) -> (i32, i32) {
    %c0_i32 = arith.constant 0 : i32
    %c0_i32_0 = arith.constant 0 : i32
    %c0_i32_1 = arith.constant 0 : i32
    return %c0_i32, %c0_i32_0 : i32, i32
  }
  func.func @transform_2(%arg0: i32) -> (i32, i32) {
    %c0_i32 = arith.constant 0 : i32
    %c0_i32_0 = arith.constant 0 : i32
    %c0_i32_1 = arith.constant 0 : i32
    return %c0_i32, %c0_i32_0 : i32, i32
  }
  func.func @transform_3(%arg0: i32) -> (i32, i32) {
    %c0_i32 = arith.constant 0 : i32
    %c0_i32_0 = arith.constant 0 : i32
    %c0_i32_1 = arith.constant 0 : i32
    return %c0_i32, %c0_i32_0 : i32, i32
  }
  func.func @transform_4(%arg0: i32) -> (i32, i32) {
    %c0_i32 = arith.constant 0 : i32
    %c0_i32_0 = arith.constant 0 : i32
    %c0_i32_1 = arith.constant 0 : i32
    return %c0_i32, %c0_i32_0 : i32, i32
  }
  func.func @transform_5(%arg0: i32) -> (i32, i32) {
    %c0_i32 = arith.constant 0 : i32
    %c0_i32_0 = arith.constant 0 : i32
    %c0_i32_1 = arith.constant 0 : i32
    return %c0_i32, %c0_i32_0 : i32, i32
  }
  func.func @transform_6(%arg0: i32) -> (i32, i32) {
    %c0_i32 = arith.constant 0 : i32
    %c0_i32_0 = arith.constant 0 : i32
    %c0_i32_1 = arith.constant 0 : i32
    return %c0_i32, %c0_i32_0 : i32, i32
  }
  func.func @transform_7(%arg0: i32) -> (i32, i32) {
    %c0_i32 = arith.constant 0 : i32
    %c0_i32_0 = arith.constant 0 : i32
    %c0_i32_1 = arith.constant 0 : i32
    return %c0_i32, %c0_i32_0 : i32, i32
  }
  func.func @transform_8(%arg0: i32) -> (i32, i32) {
    %c0_i32 = arith.constant 0 : i32
    %c0_i32_0 = arith.constant 0 : i32
    %c0_i32_1 = arith.constant 0 : i32
    return %c0_i32, %c0_i32_0 : i32, i32
  }
  func.func @transform_9(%arg0: i32) -> (i32, i32) {
    %c0_i32 = arith.constant 0 : i32
    %c0_i32_0 = arith.constant 0 : i32
    %c0_i32_1 = arith.constant 0 : i32
    return %c0_i32, %c0_i32_0 : i32, i32
  }
}

</mosaic_0001>

<llo_original>
// kernel: tpu_custom_call.1
$region0: #{tpu_custom_call.1}
  #allocation0 [shape = 'u32[]', space=smem, size = 0x4, offset = 0x4, fixed_abs, tag = 'smem constant byte address 0x4 - core index']
  #allocation1 [shape = 'u32[72,128]{1,0:T(1,128)}', space=vmem, size = 0x9000, scoped, tag = 'internal scratch']
  %s0 = inlined_call_operand.vmem [shape: bf16[8,8], index: 0, kind: input, shape index: {}]
  %s1 = inlined_call_operand.vmem [shape: f32[8,1], index: 1, kind: input, shape index: {}]
  %s2 = inlined_call_operand.vmem [shape: bf16[8,4], index: 2, kind: input, shape index: {}]
  %s3 = inlined_call_operand.vmem [shape: f32[4,16], index: 3, kind: input, shape index: {}]
  %s4 = inlined_call_operand.vmem [shape: f32[4,16], index: 4, kind: input, shape index: {}]
  %s5 = inlined_call_operand.vmem [shape: f32[1,16], index: 5, kind: input, shape index: {}]
  %s6 = inlined_call_operand.vmem [shape: f32[16,4], index: 6, kind: input, shape index: {}]
  %s7 = inlined_call_operand.vmem [shape: f32[16,4], index: 7, kind: input, shape index: {}]
  %s8 = inlined_call_operand.vmem [shape: f32[1,4], index: 8, kind: input, shape index: {}]
  %s9 = inlined_call_operand.vmem [shape: f32[8,4], index: 9, kind: output, shape index: {}]
  %s10 = sld [smem:[#allocation0]]
  $region46: #{tpu_custom_call.1} parent=0
    _
  %s12 = ssub.s32 1, %s10
  %s13 = scalar_select 0, %s12, %s10
  // Predicated region
  $region2: #{tpu_custom_call.1} parent=0 // pred_check
    _
  $region3: #{tpu_custom_call.1} parent=0 // pred_check_branch
    %15 = sbr.rel (0) target = $region5
  $region4: #{tpu_custom_call.1} parent=0 // pred_region
    _
  $region5: #{tpu_custom_call.1} parent=0 // pred_fallthru
    _
  // Predicated region
  $region6: #{tpu_custom_call.1} parent=0 // pred_check
    _
  $region7: #{tpu_custom_call.1} parent=0 // pred_check_branch
    %17 = sbr.rel (0) target = $region9
  $region8: #{tpu_custom_call.1} parent=0 // pred_region
    _
  $region9: #{tpu_custom_call.1} parent=0 // pred_fallthru
    _
  // Predicated region
  $region10: #{tpu_custom_call.1} parent=0 // pred_check
    _
  $region11: #{tpu_custom_call.1} parent=0 // pred_check_branch
    %19 = sbr.rel (0) target = $region13
  $region12: #{tpu_custom_call.1} parent=0 // pred_region
    _
  $region13: #{tpu_custom_call.1} parent=0 // pred_fallthru
    _
  // Predicated region
  $region14: #{tpu_custom_call.1} parent=0 // pred_check
    _
  $region15: #{tpu_custom_call.1} parent=0 // pred_check_branch
    %21 = sbr.rel (0) target = $region17
  $region16: #{tpu_custom_call.1} parent=0 // pred_region
    _
  $region17: #{tpu_custom_call.1} parent=0 // pred_fallthru
    _
  // Predicated region
  $region18: #{tpu_custom_call.1} parent=0 // pred_check
    _
  $region19: #{tpu_custom_call.1} parent=0 // pred_check_branch
    %23 = sbr.rel (0) target = $region21
  $region20: #{tpu_custom_call.1} parent=0 // pred_region
    _
  $region21: #{tpu_custom_call.1} parent=0 // pred_fallthru
    _
  // Predicated region
  $region22: #{tpu_custom_call.1} parent=0 // pred_check
    _
  $region23: #{tpu_custom_call.1} parent=0 // pred_check_branch
    %25 = sbr.rel (0) target = $region25
  $region24: #{tpu_custom_call.1} parent=0 // pred_region
    _
  $region25: #{tpu_custom_call.1} parent=0 // pred_fallthru
    _
  // Predicated region
  $region26: #{tpu_custom_call.1} parent=0 // pred_check
    _
  $region27: #{tpu_custom_call.1} parent=0 // pred_check_branch
    %27 = sbr.rel (0) target = $region29
  $region28: #{tpu_custom_call.1} parent=0 // pred_region
    _
  $region29: #{tpu_custom_call.1} parent=0 // pred_fallthru
    _
  // Predicated region
  $region30: #{tpu_custom_call.1} parent=0 // pred_check
    _
  $region31: #{tpu_custom_call.1} parent=0 // pred_check_branch
    %29 = sbr.rel (0) target = $region33
  $region32: #{tpu_custom_call.1} parent=0 // pred_region
    _
  $region33: #{tpu_custom_call.1} parent=0 // pred_fallthru
    _
  // Predicated region
  $region34: #{tpu_custom_call.1} parent=0 // pred_check
    _
  $region35: #{tpu_custom_call.1} parent=0 // pred_check_branch
    %31 = sbr.rel (0) target = $region37
  $region36: #{tpu_custom_call.1} parent=0 // pred_region
    _
  $region37: #{tpu_custom_call.1} parent=0 // pred_fallthru
    _
  %v33 = vld [vmem:[%s0] sm:$0xf]
  %v34 = vld [vmem:[%s2] sm:$0xf]
  %v35 = vld [vmem:[%s1] sm:$0xff]
  %vm36 = vcmask 64512
  %v38 = vsel %vm36, %v33, 0
  %vm40 = vcmask 1043456
  %v42 = vsel %vm40, %v34, 0
  %44 = vmatpush.bf16.msra.mxu0 0
  %45 = vmatpush.bf16.msra.mxu0 0
  %46 = vmatpush.bf16.msra.mxu0 0
  %47 = vmatpush.bf16.msra.mxu0 0
  %48 = vmatpush.bf16.msra.mxu0 0
  %49 = vmatpush.bf16.msra.mxu0 0
  %50 = vmatpush.bf16.msra.mxu0 0
  %51 = vmatpush.bf16.msra.mxu0 %v42
  %52 = vmatmul.bf16.gmra.mxu0 %v38
  %v53 = vpop.f32.mrf.mxu0
  %v54 = vadd.f32 0.0, %v53
  %v55 = vpop.f32.mrf.mxu0
  %56 = vdwg.mxu0
  %58 = vset.pattern.permute.xlu0 0
  %59 = vperm.xlu0 %58, %v35
  %v60 = vpop.permute.xlu0 %59
  %v62 = vmul.f32 %v60, %v54
  %v63 = vunpack.c.l.bf16 %v34
  %v64 = vld [vmem:[%s3] sm:$0xf]
  %v65 = vld [vmem:[%s4] sm:$0xf]
  %vm66 = vcmask 31744
  %v68 = vsel %vm66, %v63, 0
  %v71 = vsel %vm40, %v65, 0
  %73 = vmatpush.msra.mxu0 0.0
  %74 = vmatpush.msra.mxu0 0.0
  %75 = vmatpush.msra.mxu0 0.0
  %76 = vmatpush.msra.mxu0 0.0
  %77 = vmatpush.msra.mxu0 0.0
  %78 = vmatpush.msra.mxu0 0.0
  %79 = vmatpush.msra.mxu0 0.0
  %80 = vmatpush.msra.mxu0 0.0
  %81 = vmatpush.msra.mxu0 0.0
  %82 = vmatpush.msra.mxu0 0.0
  %83 = vmatpush.msra.mxu0 0.0
  %84 = vmatpush.msra.mxu0 0.0
  %85 = vmatpush.msra.mxu0 0.0
  %86 = vmatpush.msra.mxu0 0.0
  %87 = vmatpush.msra.mxu0 0.0
  %88 = vmatpush.msra.mxu0 %v71
  %89 = vmatmul.f32.gmra.mxu0 %v68
  %v90 = vpop.f32.mrf.mxu0
  %v91 = vadd.f32 0.0, %v90
  %92 = vdwg.mxu0
  %v94 = vsel %vm66, %v62, 0
  %v97 = vsel %vm40, %v64, 0
  %99 = vmatpush.msra.mxu0 0.0
  %100 = vmatpush.msra.mxu0 0.0
  %101 = vmatpush.msra.mxu0 0.0
  %102 = vmatpush.msra.mxu0 0.0
  %103 = vmatpush.msra.mxu0 0.0
  %104 = vmatpush.msra.mxu0 0.0
  %105 = vmatpush.msra.mxu0 0.0
  %106 = vmatpush.msra.mxu0 0.0
  %107 = vmatpush.msra.mxu0 0.0
  %108 = vmatpush.msra.mxu0 0.0
  %109 = vmatpush.msra.mxu0 0.0
  %110 = vmatpush.msra.mxu0 0.0
  %111 = vmatpush.msra.mxu0 0.0
  %112 = vmatpush.msra.mxu0 0.0
  %113 = vmatpush.msra.mxu0 0.0
  %114 = vmatpush.msra.mxu0 %v97
  %115 = vmatmul.f32.gmra.mxu0 %v94
  %v116 = vpop.f32.mrf.mxu0
  %v117 = vadd.f32 %v91, %v116
  %118 = vdwg.mxu0
  %v119 = vld [vmem:[%s5] sm:$0x1]
  %v121 = vperm.slane %v119, 0
  %v123 = vadd.f32 %v117, %v121
  %v124 = vmax.f32 %v123, 0.0
  %v125 = vpack.c.bf16 %v124, %v124
  %v127 = vsel %vm40, %v125, 0
  %129 = vmatpush.bf16.msra.mxu0 0
  %130 = vmatpush.bf16.msra.mxu0 0
  %131 = vmatpush.bf16.msra.mxu0 0
  %132 = vmatpush.bf16.msra.mxu0 0
  %133 = vmatpush.bf16.msra.mxu0 0
  %134 = vmatpush.bf16.msra.mxu0 0
  %135 = vmatpush.bf16.msra.mxu0 0
  %136 = vmatpush.bf16.msra.mxu0 %v127
  %137 = vmatmul.bf16.gmra.mxu0 %v38
  %v138 = vpop.f32.mrf.mxu0
  %v139 = vadd.f32 0.0, %v138
  %v140 = vpop.f32.mrf.mxu0
  %141 = vdwg.mxu0
  %v142 = vmul.f32 %v60, %v139
  %v143 = vld [vmem:[%s6] sm:$0xff]
  %v144 = vld [vmem:[%s6 + $0x8] sm:$0xff]
  %v145 = vld [vmem:[%s7] sm:$0xff]
  %v146 = vld [vmem:[%s7 + $0x8] sm:$0xff]
  %vm147 = vcmask 130048
  %v149 = vsel %vm147, %v124, 0
  %151 = vmatpush.msra.mxu0 0.0
  %152 = vmatpush.msra.mxu0 0.0
  %153 = vmatpush.msra.mxu0 0.0
  %154 = vmatpush.msra.mxu0 0.0
  %155 = vmatpush.msra.mxu0 0.0
  %156 = vmatpush.msra.mxu0 0.0
  %157 = vmatpush.msra.mxu0 0.0
  %158 = vmatpush.msra.mxu0 0.0
  %159 = vmatpush.msra.mxu0 0.0
  %160 = vmatpush.msra.mxu0 0.0
  %161 = vmatpush.msra.mxu0 0.0
  %162 = vmatpush.msra.mxu0 0.0
  %163 = vmatpush.msra.mxu0 0.0
  %164 = vmatpush.msra.mxu0 0.0
  %165 = vmatpush.msra.mxu0 %v146
  %166 = vmatpush.msra.mxu0 %v145
  %167 = vmatmul.f32.gmra.mxu0 %v149
  %v168 = vpop.f32.mrf.mxu0
  %v169 = vadd.f32 0.0, %v168
  %170 = vdwg.mxu0
  %v172 = vsel %vm147, %v142, 0
  %174 = vmatpush.msra.mxu0 0.0
  %175 = vmatpush.msra.mxu0 0.0
  %176 = vmatpush.msra.mxu0 0.0
  %177 = vmatpush.msra.mxu0 0.0
  %178 = vmatpush.msra.mxu0 0.0
  %179 = vmatpush.msra.mxu0 0.0
  %180 = vmatpush.msra.mxu0 0.0
  %181 = vmatpush.msra.mxu0 0.0
  %182 = vmatpush.msra.mxu0 0.0
  %183 = vmatpush.msra.mxu0 0.0
  %184 = vmatpush.msra.mxu0 0.0
  %185 = vmatpush.msra.mxu0 0.0
  %186 = vmatpush.msra.mxu0 0.0
  %187 = vmatpush.msra.mxu0 0.0
  %188 = vmatpush.msra.mxu0 %v144
  %189 = vmatpush.msra.mxu0 %v143
  %190 = vmatmul.f32.gmra.mxu0 %v172
  %v191 = vpop.f32.mrf.mxu0
  %v192 = vadd.f32 %v169, %v191
  %193 = vdwg.mxu0
  %v194 = vld [vmem:[%s8] sm:$0x1]
  %v196 = vperm.slane %v194, 0
  %v198 = vadd.f32 %v192, %v196
  %199 = vst.msk [vmem:[%s9] sm:$0xff] %vm66, %v198
  // Predicated region
  $region38: #{tpu_custom_call.1} parent=0 // pred_check
    _
  $region39: #{tpu_custom_call.1} parent=0 // pred_check_branch
    %201 = sbr.rel (0) target = $region41
  $region40: #{tpu_custom_call.1} parent=0 // pred_region
    _
  $region41: #{tpu_custom_call.1} parent=0 // pred_fallthru
    _
  // Predicated region
  $region42: #{tpu_custom_call.1} parent=0 // pred_check
    _
  $region43: #{tpu_custom_call.1} parent=0 // pred_check_branch
    %203 = sbr.rel (0) target = $region45
  $region44: #{tpu_custom_call.1} parent=0 // pred_region
    _
  $region45: #{tpu_custom_call.1} parent=0 // pred_fallthru
    _

</llo_original>
